<compile_context>
chip_gen: v7x
topology: tpu7x:2x2x1
jax: 0.10.0
libtpu: 0.0.40
codegen_flags: <defaults>
</compile_context>

<pallas_src>
import jax
import jax.numpy as jnp
from jax import lax
from jax.experimental import pallas as pl
from jax.experimental.pallas import tpu as pltpu


def fc_kernel(x_ref, w1_ref, b1_ref, w2_ref, b2_ref, w3_ref, b3_ref,
              w4_ref, b4_ref, o_ref):
    # x_ref: [tb, D] f32 (native row-major tile); wN_ref: [out, in] f32;
    # bN_ref: [out, 1] f32 (lane-broadcast); o_ref: [1, tb] f32.
    # Layer 1: Linear(D -> 16) + ReLU.  Contract D on both operands so the result
    # is [16, tb] (batch in lanes) with no transposed copy of x.
    h = lax.dot_general(w1_ref[...], x_ref[...],
                        dimension_numbers=(((1,), (1,)), ((), ())),
                        preferred_element_type=jnp.float32)
    h = jnp.maximum(h + b1_ref[...], 0.0)                                   # [16, tb]
    # Layer 2: Linear(16 -> 8) + ReLU
    h = jnp.dot(w2_ref[...], h, preferred_element_type=jnp.float32)
    h = jnp.maximum(h + b2_ref[...], 0.0)                                   # [8, tb]
    # Layer 3: Linear(8 -> 4) + ReLU
    h = jnp.dot(w3_ref[...], h, preferred_element_type=jnp.float32)
    h = jnp.maximum(h + b3_ref[...], 0.0)                                   # [4, tb]
    # Layer 4: Linear(4 -> 1) + Sigmoid (lane-dense: [1,4] @ [4,tb])
    h = jnp.dot(w4_ref[...], h, preferred_element_type=jnp.float32)
    o_ref[...] = jax.nn.sigmoid(h + b4_ref[...]).astype(o_ref.dtype)        # [1, tb]


def _pick_batch_tile(B, D, *, x_bytes=4, vmem_budget_bytes=12 * 1024 * 1024):
    """Batch-tile size (rows).

    Big enough to amortize the ~0.35us per-grid-step overhead against the tile DMA
    (cap 32768 rows), small enough that the double-buffered f32 x tile fits the
    smallest default scoped VMEM (v5e: 16 MiB -> budget ~12 MiB), and with >= 2
    grid steps when B allows so v7x's two TensorCores both get work.
    """
    if B <= 256:
        return B
    row_bytes = D * x_bytes
    vmem_cap = max(128, (vmem_budget_bytes // (2 * row_bytes)) // 128 * 128)
    cap = min(32768, vmem_cap)
    half = max(128, (pl.cdiv(B, 2) // 128) * 128)   # keep at least 2 grid steps
    return min(cap, half)


def fc_forward(x, params, *, batch_tile=None):
    """x: [B, input_size] float32.  Returns [B, 1] float32 (matches torch FC)."""
    B, D = x.shape
    tb = _pick_batch_tile(B, D) if batch_tile is None else min(batch_tile, B)
    grid = (pl.cdiv(B, tb),)

    w1, b1, w2, b2, w3, b3, w4, b4 = (params[k] for k in
                                      ("w1", "b1", "w2", "b2", "w3", "b3", "w4", "b4"))

    def resident(a):
        # Whole (tiny) array, same block index every grid step -> stays in VMEM.
        return pl.BlockSpec(a.shape, lambda i: (0, 0))

    param_bytes = sum(int(params[k].size) * 4 for k in params)
    flops_per_row = 2 * (D * 16 + 16 * 8 + 8 * 4 + 4 * 1)
    cost = pl.CostEstimate(
        flops=flops_per_row * B,
        transcendentals=B,                              # one exp per sigmoid output
        bytes_accessed=B * D * 4 + B * 4 + param_bytes  # x read + out write + params
    )

    out = pl.pallas_call(
        fc_kernel,
        out_shape=jax.ShapeDtypeStruct((1, B), jnp.float32),
        grid_spec=pl.GridSpec(
            grid=grid,
            in_specs=[
                pl.BlockSpec((tb, D), lambda i: (i, 0)),   # contiguous f32 x tile
                resident(w1), resident(b1),
                resident(w2), resident(b2),
                resident(w3), resident(b3),
                resident(w4), resident(b4),
            ],
            out_specs=pl.BlockSpec((1, tb), lambda i: (0, i)),  # lane-dense store
        ),
        compiler_params=pltpu.CompilerParams(
            dimension_semantics=("parallel",)),
        cost_estimate=cost,
    )(x, w1, b1, w2, b2, w3, b3, w4, b4)
    # (1, B) row-major has identical memory layout to (B, 1): metadata reshape only.
    return out.reshape(B, 1)


def kaiming_normal(key, out_size, in_size):
    # torch.nn.init.kaiming_normal_ default: fan_in mode, ReLU gain sqrt(2);
    # weight layout [out, in] identical to PyTorch nn.Linear.weight.
    std = jnp.sqrt(2.0 / in_size)
    return std * jax.random.normal(key, (out_size, in_size), dtype=jnp.float32)


def init_params(key, input_size):
    ks = jax.random.split(key, 4)
    sizes = [(input_size, 16), (16, 8), (8, 4), (4, 1)]
    params = {}
    for idx, ((fi, fo), k) in enumerate(zip(sizes, ks), start=1):
        params[f"w{idx}"] = kaiming_normal(k, fo, fi)
        params[f"b{idx}"] = jnp.zeros((fo, 1), dtype=jnp.float32)  # bias zero-init
    return params


def fc_reference(x, p):
    """Pure-JAX reference matching the PyTorch module: act(x @ W.T + b)."""
    h = jnp.maximum(x @ p["w1"].T + p["b1"].T, 0.0)
    h = jnp.maximum(h @ p["w2"].T + p["b2"].T, 0.0)
    h = jnp.maximum(h @ p["w3"].T + p["b3"].T, 0.0)
    return jax.nn.sigmoid(h @ p["w4"].T + p["b4"].T)


if __name__ == "__main__":
    key = jax.random.PRNGKey(0)
    kx, kp = jax.random.split(key)

    batch, input_size = 512, 32          # small, but enough for a multi-step grid
    x = jax.random.normal(kx, (batch, input_size), dtype=jnp.float32)
    params = init_params(kp, input_size)

    out = fc_forward(x, params, batch_tile=128)   # grid = (4,), pipelined
    out = jax.block_until_ready(out)
    assert out.shape == (batch, 1), out.shape

    # Also exercise the auto tile picker (grid = (2,) here).
    out_auto = jax.block_until_ready(fc_forward(x, params))
    assert out_auto.shape == (batch, 1), out_auto.shape

    # Everything runs in f32 now -> compare against the exact f32 reference
    # (tolerance covers MXU f32 accumulation-order / pass differences only).
    ref = fc_reference(x, params)
    err = float(jnp.max(jnp.abs(out - ref)))
    err_auto = float(jnp.max(jnp.abs(out_auto - ref)))
    assert err < 1e-2, f"mismatch vs f32 reference: {err}"
    assert err_auto < 1e-2, f"mismatch vs f32 reference (auto tile): {err_auto}"

    print("KERNEL_OK")
</pallas_src>

<mosaic_0001>
module attributes {stable_mosaic.version = 11 : i64} {
  func.func @fc_kernel(%arg0: i32, %arg1: memref<128x32xf32, #tpu.memory_space<vmem>>, %arg2: memref<16x32xf32, #tpu.memory_space<vmem>>, %arg3: memref<16x1xf32, #tpu.memory_space<vmem>>, %arg4: memref<8x16xf32, #tpu.memory_space<vmem>>, %arg5: memref<8x1xf32, #tpu.memory_space<vmem>>, %arg6: memref<4x8xf32, #tpu.memory_space<vmem>>, %arg7: memref<4x1xf32, #tpu.memory_space<vmem>>, %arg8: memref<1x4xf32, #tpu.memory_space<vmem>>, %arg9: memref<1x1xf32, #tpu.memory_space<vmem>>, %arg10: memref<1x128xf32, #tpu.memory_space<vmem>>) attributes {dimension_semantics = [#tpu.dimension_semantics<parallel>], iteration_bounds = array<i64: 4>, scalar_prefetch = 0 : i64, scratch_operands = 0 : i64, tpu.core_type = #tpu.core_type<tc>, window_params = [{transform_indices = @transform_0, window_bounds = array<i64: 128, 32>}, {pipeline_mode = #tpu.pipeline_mode<synchronous>, transform_indices = @transform_1, window_bounds = array<i64: 16, 32>}, {pipeline_mode = #tpu.pipeline_mode<synchronous>, transform_indices = @transform_2, window_bounds = array<i64: 16, 1>}, {pipeline_mode = #tpu.pipeline_mode<synchronous>, transform_indices = @transform_3, window_bounds = array<i64: 8, 16>}, {pipeline_mode = #tpu.pipeline_mode<synchronous>, transform_indices = @transform_4, window_bounds = array<i64: 8, 1>}, {pipeline_mode = #tpu.pipeline_mode<synchronous>, transform_indices = @transform_5, window_bounds = array<i64: 4, 8>}, {pipeline_mode = #tpu.pipeline_mode<synchronous>, transform_indices = @transform_6, window_bounds = array<i64: 4, 1>}, {pipeline_mode = #tpu.pipeline_mode<synchronous>, transform_indices = @transform_7, window_bounds = array<i64: 1, 4>}, {pipeline_mode = #tpu.pipeline_mode<synchronous>, transform_indices = @transform_8, window_bounds = array<i64: 1, 1>}, {transform_indices = @transform_9, window_bounds = array<i64: 1, 128>}]} {
    %c0 = arith.constant 0 : index
    %c0_0 = arith.constant 0 : index
    %0 = vector.load %arg2[%c0, %c0_0] : memref<16x32xf32, #tpu.memory_space<vmem>>, vector<16x32xf32>
    %c0_1 = arith.constant 0 : index
    %c0_2 = arith.constant 0 : index
    %1 = vector.load %arg1[%c0_1, %c0_2] : memref<128x32xf32, #tpu.memory_space<vmem>>, vector<128x32xf32>
    %cst = arith.constant dense<0.000000e+00> : vector<16x128xf32>
    %2 = tpu.matmul %0, %1, %cst {dimension_numbers = #tpu.dot_dimension_numbers<[1], [1], [0], [0], [0, 0, 1, 0], [], []>} : vector<16x32xf32>, vector<128x32xf32>, vector<16x128xf32> -> vector<16x128xf32>
    %c0_3 = arith.constant 0 : index
    %c0_4 = arith.constant 0 : index
    %3 = vector.load %arg3[%c0_3, %c0_4] : memref<16x1xf32, #tpu.memory_space<vmem>>, vector<16x1xf32>
    %4 = vector.broadcast %3 : vector<16x1xf32> to vector<16x128xf32>
    %5 = arith.addf %2, %4 : vector<16x128xf32>
    %cst_5 = arith.constant 0.000000e+00 : f32
    %6 = vector.broadcast %cst_5 : f32 to vector<16x128xf32>
    %7 = arith.maximumf %5, %6 : vector<16x128xf32>
    %c0_6 = arith.constant 0 : index
    %c0_7 = arith.constant 0 : index
    %8 = vector.load %arg4[%c0_6, %c0_7] : memref<8x16xf32, #tpu.memory_space<vmem>>, vector<8x16xf32>
    %cst_8 = arith.constant dense<0.000000e+00> : vector<8x128xf32>
    %9 = tpu.matmul %8, %7, %cst_8 {dimension_numbers = #tpu.dot_dimension_numbers<[1], [0], [0], [1], [0, 0, 1, 1], [], []>} : vector<8x16xf32>, vector<16x128xf32>, vector<8x128xf32> -> vector<8x128xf32>
    %c0_9 = arith.constant 0 : index
    %c0_10 = arith.constant 0 : index
    %10 = vector.load %arg5[%c0_9, %c0_10] : memref<8x1xf32, #tpu.memory_space<vmem>>, vector<8x1xf32>
    %11 = vector.broadcast %10 : vector<8x1xf32> to vector<8x128xf32>
    %12 = arith.addf %9, %11 : vector<8x128xf32>
    %cst_11 = arith.constant 0.000000e+00 : f32
    %13 = vector.broadcast %cst_11 : f32 to vector<8x128xf32>
    %14 = arith.maximumf %12, %13 : vector<8x128xf32>
    %c0_12 = arith.constant 0 : index
    %c0_13 = arith.constant 0 : index
    %15 = vector.load %arg6[%c0_12, %c0_13] : memref<4x8xf32, #tpu.memory_space<vmem>>, vector<4x8xf32>
    %cst_14 = arith.constant dense<0.000000e+00> : vector<4x128xf32>
    %16 = tpu.matmul %15, %14, %cst_14 {dimension_numbers = #tpu.dot_dimension_numbers<[1], [0], [0], [1], [0, 0, 1, 1], [], []>} : vector<4x8xf32>, vector<8x128xf32>, vector<4x128xf32> -> vector<4x128xf32>
    %c0_15 = arith.constant 0 : index
    %c0_16 = arith.constant 0 : index
    %17 = vector.load %arg7[%c0_15, %c0_16] : memref<4x1xf32, #tpu.memory_space<vmem>>, vector<4x1xf32>
    %18 = vector.broadcast %17 : vector<4x1xf32> to vector<4x128xf32>
    %19 = arith.addf %16, %18 : vector<4x128xf32>
    %cst_17 = arith.constant 0.000000e+00 : f32
    %20 = vector.broadcast %cst_17 : f32 to vector<4x128xf32>
    %21 = arith.maximumf %19, %20 : vector<4x128xf32>
    %c0_18 = arith.constant 0 : index
    %c0_19 = arith.constant 0 : index
    %22 = vector.load %arg8[%c0_18, %c0_19] : memref<1x4xf32, #tpu.memory_space<vmem>>, vector<1x4xf32>
    %cst_20 = arith.constant dense<0.000000e+00> : vector<1x128xf32>
    %23 = tpu.matmul %22, %21, %cst_20 {dimension_numbers = #tpu.dot_dimension_numbers<[1], [0], [0], [1], [0, 0, 1, 1], [], []>} : vector<1x4xf32>, vector<4x128xf32>, vector<1x128xf32> -> vector<1x128xf32>
    %c0_21 = arith.constant 0 : index
    %c0_22 = arith.constant 0 : index
    %24 = vector.load %arg9[%c0_21, %c0_22] : memref<1x1xf32, #tpu.memory_space<vmem>>, vector<1x1xf32>
    %25 = vector.broadcast %24 : vector<1x1xf32> to vector<1x128xf32>
    %26 = arith.addf %23, %25 : vector<1x128xf32>
    %27 = arith.negf %26 : vector<1x128xf32>
    %28 = math.exp %27 : vector<1x128xf32>
    %cst_23 = arith.constant 1.000000e+00 : f32
    %29 = vector.broadcast %cst_23 : f32 to vector<1x128xf32>
    %30 = arith.addf %29, %28 : vector<1x128xf32>
    %31 = arith.divf %29, %30 : vector<1x128xf32>
    %c0_24 = arith.constant 0 : index
    %c0_25 = arith.constant 0 : index
    %32 = vector.load %arg10[%c0_24, %c0_25] : memref<1x128xf32, #tpu.memory_space<vmem>>, vector<1x128xf32>
    tpu.vector_store %arg10[%c0_24, %c0_25], %31 {strides = array<i32>} : memref<1x128xf32, #tpu.memory_space<vmem>>, vector<1x128xf32>,
    return
  }
  func.func @transform_0(%arg0: i32) -> (i32, i32) {
    %c0_i32 = arith.constant 0 : i32
    %c0_i32_0 = arith.constant 0 : i32
    return %arg0, %c0_i32 : i32, i32
  }
  func.func @transform_1(%arg0: i32) -> (i32, i32) {
    %c0_i32 = arith.constant 0 : i32
    %c0_i32_0 = arith.constant 0 : i32
    %c0_i32_1 = arith.constant 0 : i32
    return %c0_i32, %c0_i32_0 : i32, i32
  }
  func.func @transform_2(%arg0: i32) -> (i32, i32) {
    %c0_i32 = arith.constant 0 : i32
    %c0_i32_0 = arith.constant 0 : i32
    %c0_i32_1 = arith.constant 0 : i32
    return %c0_i32, %c0_i32_0 : i32, i32
  }
  func.func @transform_3(%arg0: i32) -> (i32, i32) {
    %c0_i32 = arith.constant 0 : i32
    %c0_i32_0 = arith.constant 0 : i32
    %c0_i32_1 = arith.constant 0 : i32
    return %c0_i32, %c0_i32_0 : i32, i32
  }
  func.func @transform_4(%arg0: i32) -> (i32, i32) {
    %c0_i32 = arith.constant 0 : i32
    %c0_i32_0 = arith.constant 0 : i32
    %c0_i32_1 = arith.constant 0 : i32
    return %c0_i32, %c0_i32_0 : i32, i32
  }
  func.func @transform_5(%arg0: i32) -> (i32, i32) {
    %c0_i32 = arith.constant 0 : i32
    %c0_i32_0 = arith.constant 0 : i32
    %c0_i32_1 = arith.constant 0 : i32
    return %c0_i32, %c0_i32_0 : i32, i32
  }
  func.func @transform_6(%arg0: i32) -> (i32, i32) {
    %c0_i32 = arith.constant 0 : i32
    %c0_i32_0 = arith.constant 0 : i32
    %c0_i32_1 = arith.constant 0 : i32
    return %c0_i32, %c0_i32_0 : i32, i32
  }
  func.func @transform_7(%arg0: i32) -> (i32, i32) {
    %c0_i32 = arith.constant 0 : i32
    %c0_i32_0 = arith.constant 0 : i32
    %c0_i32_1 = arith.constant 0 : i32
    return %c0_i32, %c0_i32_0 : i32, i32
  }
  func.func @transform_8(%arg0: i32) -> (i32, i32) {
    %c0_i32 = arith.constant 0 : i32
    %c0_i32_0 = arith.constant 0 : i32
    %c0_i32_1 = arith.constant 0 : i32
    return %c0_i32, %c0_i32_0 : i32, i32
  }
  func.func @transform_9(%arg0: i32) -> (i32, i32) {
    %c0_i32 = arith.constant 0 : i32
    %c0_i32_0 = arith.constant 0 : i32
    return %c0_i32, %arg0 : i32, i32
  }
}

</mosaic_0001>

<llo_original>
// kernel: tpu_custom_call.1
$region0: #{tpu_custom_call.1}
  #allocation0 [shape = 'u32[]', space=smem, size = 0x4, offset = 0x4, fixed_abs, tag = 'smem constant byte address 0x4 - core index']
  #allocation1 [shape = 'u32[144,128]{1,0:T(1,128)}', space=vmem, size = 0x12000, scoped, tag = 'internal scratch']
  #allocation2 [shape = 'f32[1,1]{1,0:T(1,128)S(1)}', space=vmem, size = 0x200, scoped, tag = 'scoped memory for tpu_custom_call.1']
  %s0 = inlined_call_operand.vmem [shape: f32[512,32], index: 0, kind: input, shape index: {}]
  %s1 = inlined_call_operand.vmem [shape: f32[16,32], index: 1, kind: input, shape index: {}]
  %s2 = inlined_call_operand.vmem [shape: f32[16,1], index: 2, kind: input, shape index: {}]
  %s3 = inlined_call_operand.vmem [shape: f32[8,16], index: 3, kind: input, shape index: {}]
  %s4 = inlined_call_operand.vmem [shape: f32[8,1], index: 4, kind: input, shape index: {}]
  %s5 = inlined_call_operand.vmem [shape: f32[4,8], index: 5, kind: input, shape index: {}]
  %s6 = inlined_call_operand.vmem [shape: f32[4,1], index: 6, kind: input, shape index: {}]
  %s7 = inlined_call_operand.vmem [shape: f32[1,4], index: 7, kind: input, shape index: {}]
  %s8 = inlined_call_operand.<no memory space> [shape: f32[1,1], index: 8, kind: input, shape index: {}]
  %s9 = inlined_call_operand.hbm [shape: f32[1,512], index: 9, kind: output, shape index: {}]
  %s10 = sld [smem:[#allocation0]]
  $region69: #{tpu_custom_call.1} parent=0
    _
  %s12 = ssub.s32 1, %s10
  %s13 = scalar_select 0, %s12, %s10
  %v14 = vstv %s8
  %15 = vst [vmem:[#allocation2] sm:$0x1] %v14
  $region1: #{tpu_custom_call.1} parent=0
    #allocation3 [shape = 'u8[1024]{0}', space=vmem, size = 0x400, scoped, tag = 'output window, operand 0']
    #allocation4 [shape = 's32[2]{0}', space=sflag, size = 0x8, scoped, tag = 'scoped memory for tpu_custom_call.1']
    %16 = vsyncpa [#allocation4], 0
    %s17 = scalar_lea.sflag [#allocation4], 1
    %18 = vsyncpa %s17, 0
    loop: start=0, step=1, limit=6
    $region2: #{tpu_custom_call.1} parent=1 // loop_pre_header
      _
    $region3: #{tpu_custom_call.1} parent=1 // loop_header
      %s20 = sphi 0, %s24
      %p21 = scmp.ge.s32.totalorder %s20, 6
      %s30 = sphi 0, %s32
      %s33 = sphi 0, %s30
      %s34 = sphi 0, %s33
      %s50 = sphi 0, %s34
      %s54 = sphi 0, %s54
      %s56 = sphi 0, %s54
      %s57 = sphi 0, %s56
      %s71 = sphi 0, %s57
      %s75 = sphi 0, %s75
      %s77 = sphi 0, %s75
      %s78 = sphi 0, %s77
      %s92 = sphi 0, %s78
      %s96 = sphi 0, %s96
      %s98 = sphi 0, %s96
      %s99 = sphi 0, %s98
      %s113 = sphi 0, %s99
      %s117 = sphi 0, %s117
      %s119 = sphi 0, %s117
      %s120 = sphi 0, %s119
      %s134 = sphi 0, %s120
      %s138 = sphi 0, %s138
      %s140 = sphi 0, %s138
      %s141 = sphi 0, %s140
      %s155 = sphi 0, %s141
      %s159 = sphi 0, %s159
      %s161 = sphi 0, %s159
      %s162 = sphi 0, %s161
      %s176 = sphi 0, %s162
      %s180 = sphi 0, %s180
      %s182 = sphi 0, %s180
      %s183 = sphi 0, %s182
      %s197 = sphi 0, %s183
      %s201 = sphi 0, %s201
      %s203 = sphi 0, %s201
      %s204 = sphi 0, %s203
      %s218 = sphi 0, %s204
      %s224 = sphi 0, %s226
      %s227 = sphi 0, %s224
      %s228 = sphi 0, %s227
      %s244 = sphi 0, %s228
    $region4: #{tpu_custom_call.1} parent=1 // loop_header_branch
      %23 = sbr.rel (%p21) target = $region8
    $region5: #{tpu_custom_call.1} parent=1 // loop_body
      %s25 = ssub.s32 %s20, 1
      %s26 = ssub.s32 %s20, 2
      %s27 = sadd.s32 %s20, 1
      %s28 = ssub.s32 %s20, %s27
      %p29 = scmp.eq.s32.totalorder %s28, 0
      %s31 = sadd.s32 %s30, 1
      %s32 = scalar_select %p29, %s30, %s31
      %p35 = pneg %p29
      %p36 = scmp.eq.s32.totalorder %s20, 3
      %p37 = por %p35, %p36
      %p38 = scmp.ne.s32.totalorder %s30, %s33
      %p39 = scmp.eq.s32.totalorder %s20, 0
      %p40 = por %p38, %p39
      %p41 = scmp.ne.s32.totalorder %s30, %s33
      %p42 = scmp.eq.s32.totalorder %s25, 3
      %p43 = por %p41, %p42
      %p44 = scmp.ne.s32.totalorder %s33, %s34
      %p45 = scmp.eq.s32.totalorder %s25, 0
      %p46 = por %p44, %p45
      %p47 = scmp.ne.s32.totalorder %s33, %s34
      %p48 = scmp.eq.s32.totalorder %s26, 3
      %p49 = por %p47, %p48
      %p51 = scmp.ne.s32.totalorder %s34, %s50
      %p52 = scmp.eq.s32.totalorder %s26, 0
      %p53 = por %p51, %p52
      %s55 = sadd.s32 %s54, 1
      %p58 = scmp.eq.s32.totalorder %s20, 3
      %p59 = scmp.ne.s32.totalorder %s54, %s56
      %p60 = scmp.eq.s32.totalorder %s20, 0
      %p61 = por %p59, %p60
      %p62 = scmp.ne.s32.totalorder %s54, %s56
      %p63 = scmp.eq.s32.totalorder %s25, 3
      %p64 = por %p62, %p63
      %p65 = scmp.ne.s32.totalorder %s56, %s57
      %p66 = scmp.eq.s32.totalorder %s25, 0
      %p67 = por %p65, %p66
      %p68 = scmp.ne.s32.totalorder %s56, %s57
      %p69 = scmp.eq.s32.totalorder %s26, 3
      %p70 = por %p68, %p69
      %p72 = scmp.ne.s32.totalorder %s57, %s71
      %p73 = scmp.eq.s32.totalorder %s26, 0
      %p74 = por %p72, %p73
      %s76 = sadd.s32 %s75, 1
      %p79 = scmp.eq.s32.totalorder %s20, 3
      %p80 = scmp.ne.s32.totalorder %s75, %s77
      %p81 = scmp.eq.s32.totalorder %s20, 0
      %p82 = por %p80, %p81
      %p83 = scmp.ne.s32.totalorder %s75, %s77
      %p84 = scmp.eq.s32.totalorder %s25, 3
      %p85 = por %p83, %p84
      %p86 = scmp.ne.s32.totalorder %s77, %s78
      %p87 = scmp.eq.s32.totalorder %s25, 0
      %p88 = por %p86, %p87
      %p89 = scmp.ne.s32.totalorder %s77, %s78
      %p90 = scmp.eq.s32.totalorder %s26, 3
      %p91 = por %p89, %p90
      %p93 = scmp.ne.s32.totalorder %s78, %s92
      %p94 = scmp.eq.s32.totalorder %s26, 0
      %p95 = por %p93, %p94
      %s97 = sadd.s32 %s96, 1
      %p100 = scmp.eq.s32.totalorder %s20, 3
      %p101 = scmp.ne.s32.totalorder %s96, %s98
      %p102 = scmp.eq.s32.totalorder %s20, 0
      %p103 = por %p101, %p102
      %p104 = scmp.ne.s32.totalorder %s96, %s98
      %p105 = scmp.eq.s32.totalorder %s25, 3
      %p106 = por %p104, %p105
      %p107 = scmp.ne.s32.totalorder %s98, %s99
      %p108 = scmp.eq.s32.totalorder %s25, 0
      %p109 = por %p107, %p108
      %p110 = scmp.ne.s32.totalorder %s98, %s99
      %p111 = scmp.eq.s32.totalorder %s26, 3
      %p112 = por %p110, %p111
      %p114 = scmp.ne.s32.totalorder %s99, %s113
      %p115 = scmp.eq.s32.totalorder %s26, 0
      %p116 = por %p114, %p115
      %s118 = sadd.s32 %s117, 1
      %p121 = scmp.eq.s32.totalorder %s20, 3
      %p122 = scmp.ne.s32.totalorder %s117, %s119
      %p123 = scmp.eq.s32.totalorder %s20, 0
      %p124 = por %p122, %p123
      %p125 = scmp.ne.s32.totalorder %s117, %s119
      %p126 = scmp.eq.s32.totalorder %s25, 3
      %p127 = por %p125, %p126
      %p128 = scmp.ne.s32.totalorder %s119, %s120
      %p129 = scmp.eq.s32.totalorder %s25, 0
      %p130 = por %p128, %p129
      %p131 = scmp.ne.s32.totalorder %s119, %s120
      %p132 = scmp.eq.s32.totalorder %s26, 3
      %p133 = por %p131, %p132
      %p135 = scmp.ne.s32.totalorder %s120, %s134
      %p136 = scmp.eq.s32.totalorder %s26, 0
      %p137 = por %p135, %p136
      %s139 = sadd.s32 %s138, 1
      %p142 = scmp.eq.s32.totalorder %s20, 3
      %p143 = scmp.ne.s32.totalorder %s138, %s140
      %p144 = scmp.eq.s32.totalorder %s20, 0
      %p145 = por %p143, %p144
      %p146 = scmp.ne.s32.totalorder %s138, %s140
      %p147 = scmp.eq.s32.totalorder %s25, 3
      %p148 = por %p146, %p147
      %p149 = scmp.ne.s32.totalorder %s140, %s141
      %p150 = scmp.eq.s32.totalorder %s25, 0
      %p151 = por %p149, %p150
      %p152 = scmp.ne.s32.totalorder %s140, %s141
      %p153 = scmp.eq.s32.totalorder %s26, 3
      %p154 = por %p152, %p153
      %p156 = scmp.ne.s32.totalorder %s141, %s155
      %p157 = scmp.eq.s32.totalorder %s26, 0
      %p158 = por %p156, %p157
      %s160 = sadd.s32 %s159, 1
      %p163 = scmp.eq.s32.totalorder %s20, 3
      %p164 = scmp.ne.s32.totalorder %s159, %s161
      %p165 = scmp.eq.s32.totalorder %s20, 0
      %p166 = por %p164, %p165
      %p167 = scmp.ne.s32.totalorder %s159, %s161
      %p168 = scmp.eq.s32.totalorder %s25, 3
      %p169 = por %p167, %p168
      %p170 = scmp.ne.s32.totalorder %s161, %s162
      %p171 = scmp.eq.s32.totalorder %s25, 0
      %p172 = por %p170, %p171
      %p173 = scmp.ne.s32.totalorder %s161, %s162
      %p174 = scmp.eq.s32.totalorder %s26, 3
      %p175 = por %p173, %p174
      %p177 = scmp.ne.s32.totalorder %s162, %s176
      %p178 = scmp.eq.s32.totalorder %s26, 0
      %p179 = por %p177, %p178
      %s181 = sadd.s32 %s180, 1
      %p184 = scmp.eq.s32.totalorder %s20, 3
      %p185 = scmp.ne.s32.totalorder %s180, %s182
      %p186 = scmp.eq.s32.totalorder %s20, 0
      %p187 = por %p185, %p186
      %p188 = scmp.ne.s32.totalorder %s180, %s182
      %p189 = scmp.eq.s32.totalorder %s25, 3
      %p190 = por %p188, %p189
      %p191 = scmp.ne.s32.totalorder %s182, %s183
      %p192 = scmp.eq.s32.totalorder %s25, 0
      %p193 = por %p191, %p192
      %p194 = scmp.ne.s32.totalorder %s182, %s183
      %p195 = scmp.eq.s32.totalorder %s26, 3
      %p196 = por %p194, %p195
      %p198 = scmp.ne.s32.totalorder %s183, %s197
      %p199 = scmp.eq.s32.totalorder %s26, 0
      %p200 = por %p198, %p199
      %s202 = sadd.s32 %s201, 1
      %p205 = scmp.eq.s32.totalorder %s20, 3
      %p206 = scmp.ne.s32.totalorder %s201, %s203
      %p207 = scmp.eq.s32.totalorder %s20, 0
      %p208 = por %p206, %p207
      %p209 = scmp.ne.s32.totalorder %s201, %s203
      %p210 = scmp.eq.s32.totalorder %s25, 3
      %p211 = por %p209, %p210
      %p212 = scmp.ne.s32.totalorder %s203, %s204
      %p213 = scmp.eq.s32.totalorder %s25, 0
      %p214 = por %p212, %p213
      %p215 = scmp.ne.s32.totalorder %s203, %s204
      %p216 = scmp.eq.s32.totalorder %s26, 3
      %p217 = por %p215, %p216
      %p219 = scmp.ne.s32.totalorder %s204, %s218
      %p220 = scmp.eq.s32.totalorder %s26, 0
      %p221 = por %p219, %p220
      %s222 = ssub.s32 %s20, %s27
      %p223 = scmp.eq.s32.totalorder %s222, 0
      %s225 = sadd.s32 %s224, 1
      %s226 = scalar_select %p223, %s224, %s225
      %p229 = pneg %p223
      %p230 = scmp.eq.s32.totalorder %s20, 3
      %p231 = por %p229, %p230
      %p232 = scmp.ne.s32.totalorder %s224, %s227
      %p233 = scmp.eq.s32.totalorder %s20, 0
      %p234 = por %p232, %p233
      %p235 = scmp.ne.s32.totalorder %s224, %s227
      %p236 = scmp.eq.s32.totalorder %s25, 3
      %p237 = por %p235, %p236
      %p238 = scmp.ne.s32.totalorder %s227, %s228
      %p239 = scmp.eq.s32.totalorder %s25, 0
      %p240 = por %p238, %p239
      %p241 = scmp.ne.s32.totalorder %s227, %s228
      %p242 = scmp.eq.s32.totalorder %s26, 3
      %p243 = por %p241, %p242
      %p245 = scmp.ne.s32.totalorder %s228, %s244
      %p246 = scmp.eq.s32.totalorder %s26, 0
      %p247 = por %p245, %p246
      %p248 = scmp.le.s32.totalorder 1, %s20
      %p249 = scmp.lt.s32.totalorder %s20, 5
      %p250 = pnand %p248, %p249
      %p251 = pneg %p250
      // Predicated region
      $region9: #{tpu_custom_call.1} parent=5 // pred_check
        _
      $region10: #{tpu_custom_call.1} parent=5 // pred_check_branch
        %253 = sbr.rel (%p250) target = $region12
      $region11: #{tpu_custom_call.1} parent=5 // pred_region
        %s254 = ssub.s32 %s20, 1
        // Predicated region
        $region13: #{tpu_custom_call.1} parent=11 // pred_check
          %p255 = pneg %p67
        $region14: #{tpu_custom_call.1} parent=11 // pred_check_branch
          %257 = sbr.rel (%p255) target = $region16
        $region15: #{tpu_custom_call.1} parent=11 // pred_region
          _
        $region16: #{tpu_custom_call.1} parent=11 // pred_fallthru
          _
        // Predicated region
        $region17: #{tpu_custom_call.1} parent=11 // pred_check
          %p258 = pneg %p88
        $region18: #{tpu_custom_call.1} parent=11 // pred_check_branch
          %260 = sbr.rel (%p258) target = $region20
        $region19: #{tpu_custom_call.1} parent=11 // pred_region
          _
        $region20: #{tpu_custom_call.1} parent=11 // pred_fallthru
          _
        // Predicated region
        $region21: #{tpu_custom_call.1} parent=11 // pred_check
          %p261 = pneg %p109
        $region22: #{tpu_custom_call.1} parent=11 // pred_check_branch
          %263 = sbr.rel (%p261) target = $region24
        $region23: #{tpu_custom_call.1} parent=11 // pred_region
          _
        $region24: #{tpu_custom_call.1} parent=11 // pred_fallthru
          _
        // Predicated region
        $region25: #{tpu_custom_call.1} parent=11 // pred_check
          %p264 = pneg %p130
        $region26: #{tpu_custom_call.1} parent=11 // pred_check_branch
          %266 = sbr.rel (%p264) target = $region28
        $region27: #{tpu_custom_call.1} parent=11 // pred_region
          _
        $region28: #{tpu_custom_call.1} parent=11 // pred_fallthru
          _
        // Predicated region
        $region29: #{tpu_custom_call.1} parent=11 // pred_check
          %p267 = pneg %p151
        $region30: #{tpu_custom_call.1} parent=11 // pred_check_branch
          %269 = sbr.rel (%p267) target = $region32
        $region31: #{tpu_custom_call.1} parent=11 // pred_region
          _
        $region32: #{tpu_custom_call.1} parent=11 // pred_fallthru
          _
        // Predicated region
        $region33: #{tpu_custom_call.1} parent=11 // pred_check
          %p270 = pneg %p172
        $region34: #{tpu_custom_call.1} parent=11 // pred_check_branch
          %272 = sbr.rel (%p270) target = $region36
        $region35: #{tpu_custom_call.1} parent=11 // pred_region
          _
        $region36: #{tpu_custom_call.1} parent=11 // pred_fallthru
          _
        // Predicated region
        $region37: #{tpu_custom_call.1} parent=11 // pred_check
          %p273 = pneg %p193
        $region38: #{tpu_custom_call.1} parent=11 // pred_check_branch
          %275 = sbr.rel (%p273) target = $region40
        $region39: #{tpu_custom_call.1} parent=11 // pred_region
          _
        $region40: #{tpu_custom_call.1} parent=11 // pred_fallthru
          _
        // Predicated region
        $region41: #{tpu_custom_call.1} parent=11 // pred_check
          %p276 = pneg %p214
        $region42: #{tpu_custom_call.1} parent=11 // pred_check_branch
          %278 = sbr.rel (%p276) target = $region44
        $region43: #{tpu_custom_call.1} parent=11 // pred_region
          _
        $region44: #{tpu_custom_call.1} parent=11 // pred_fallthru
          _
      $region12: #{tpu_custom_call.1} parent=5 // pred_fallthru
        _
      %p279 = scmp.lt.s32.totalorder %s20, 4
      // Predicated region
      $region45: #{tpu_custom_call.1} parent=5 // pred_check
        %p280 = pneg %p279
      $region46: #{tpu_custom_call.1} parent=5 // pred_check_branch
        %282 = sbr.rel (%p280) target = $region48
      $region47: #{tpu_custom_call.1} parent=5 // pred_region
        // Predicated region
        $region49: #{tpu_custom_call.1} parent=47 // pred_check
          %p283 = pneg %p40
        $region50: #{tpu_custom_call.1} parent=47 // pred_check_branch
          %285 = sbr.rel (%p283) target = $region52
        $region51: #{tpu_custom_call.1} parent=47 // pred_region
          %s286 = smul.u32 16, %s20
          %p287 = scmp.lt.s32.totalorder %s286, 63
          %s288 = scalar_select %p287, %s286, 63
          %s289 = smul.addr %s288, 8
          %s290 = scalar_lea.vmem %s0, %s289
          %s291 = smul.u32 16, %s20
        $region52: #{tpu_custom_call.1} parent=47 // pred_fallthru
          _
      $region48: #{tpu_custom_call.1} parent=5 // pred_fallthru
        _
      %p292 = scmp.le.s32.totalorder 1, %s20
      %p293 = scmp.lt.s32.totalorder %s20, 5
      %p294 = pnand %p292, %p293
      %p295 = pneg %p294
      // Predicated region
      $region53: #{tpu_custom_call.1} parent=5 // pred_check
        _
      $region54: #{tpu_custom_call.1} parent=5 // pred_check_branch
        %297 = sbr.rel (%p294) target = $region56
      $region55: #{tpu_custom_call.1} parent=5 // pred_region
        %s298 = ssub.s32 %s20, 1
        %s299 = smul.u32 16, %s25
        %p300 = scmp.lt.s32.totalorder %s299, 63
        %s301 = scalar_select %p300, %s299, 63
        %s302 = smul.addr %s301, 8
        %s303 = scalar_lea.vmem %s0, %s302
        %p304 = pneg %p46
        %p305 = pneg %p43
        %p306 = pneg %p67
        %p307 = pneg %p64
        %p308 = pneg %p88
        %p309 = pneg %p85
        %p310 = pneg %p109
        %p311 = pneg %p106
        %p312 = pneg %p130
        %p313 = pneg %p127
        %p314 = pneg %p151
        %p315 = pneg %p148
        %p316 = pneg %p172
        %p317 = pneg %p169
        %p318 = pneg %p193
        %p319 = pneg %p190
        %p320 = pneg %p214
        %p321 = pneg %p211
        %p322 = pneg %p240
        %p323 = pneg %p237
        %s324 = sand.u32 %s227, 1
        %s325 = scalar_lea.sflag [#allocation4], %s324
        %s326 = sand.u32 %s227, 1
        %s327 = scalar_lea.vmem [#allocation3], %s326
        %s328 = smul.u32 16, %s25
        %p329 = scmp.lt.s32.totalorder %s328, 63
        %s330 = scalar_select %p329, %s328, 63
        %s331 = smul.addr %s330, 8
        %s332 = scalar_lea.vmem %s0, %s331
        %s333 = smul.u32 16, %s25
        %v334 = vld [vmem:[%s1] sm:$0xff]
        %v335 = vld [vmem:[%s1 + $0x8] sm:$0xff]
        %v336 = vld [vmem:[%s332] sm:$0xff]
        %v337 = vld [vmem:[%s332 + $0x8] sm:$0xff]
        %v338 = vld [vmem:[%s332 + $0x10] sm:$0xff]
        %v339 = vld [vmem:[%s332 + $0x18] sm:$0xff]
        %v340 = vld [vmem:[%s332 + $0x20] sm:$0xff]
        %v341 = vld [vmem:[%s332 + $0x28] sm:$0xff]
        %v342 = vld [vmem:[%s332 + $0x30] sm:$0xff]
        %v343 = vld [vmem:[%s332 + $0x38] sm:$0xff]
        %v344 = vld [vmem:[%s332 + $0x40] sm:$0xff]
        %v345 = vld [vmem:[%s332 + $0x48] sm:$0xff]
        %v346 = vld [vmem:[%s332 + $0x50] sm:$0xff]
        %v347 = vld [vmem:[%s332 + $0x58] sm:$0xff]
        %v348 = vld [vmem:[%s332 + $0x60] sm:$0xff]
        %v349 = vld [vmem:[%s332 + $0x68] sm:$0xff]
        %v350 = vld [vmem:[%s332 + $0x70] sm:$0xff]
        %v351 = vld [vmem:[%s332 + $0x78] sm:$0xff]
        %v352 = vld [vmem:[%s2] sm:$0xff]
        %v353 = vld [vmem:[%s2 + $0x8] sm:$0xff]
        %355 = vset.pattern.permute.xlu0 0
        %356 = vperm.xlu0 %355, %v352
        %v357 = vpop.permute.xlu0 %356
        %360 = vset.pattern.permute.xlu0 0
        %361 = vperm.xlu0 %360, %v353
        %v362 = vpop.permute.xlu0 %361
        %vm364 = vcmask 261120
        %v366 = vsel %vm364, %v334, 0
        %v369 = vsel %vm364, %v335, 0
        %v372 = vsel %vm364, %v336, 0
        %v375 = vsel %vm364, %v337, 0
        %v378 = vsel %vm364, %v338, 0
        %v381 = vsel %vm364, %v339, 0
        %v384 = vsel %vm364, %v340, 0
        %v387 = vsel %vm364, %v341, 0
        %v390 = vsel %vm364, %v342, 0
        %v393 = vsel %vm364, %v343, 0
        %v396 = vsel %vm364, %v344, 0
        %v399 = vsel %vm364, %v345, 0
        %v402 = vsel %vm364, %v346, 0
        %v405 = vsel %vm364, %v347, 0
        %v408 = vsel %vm364, %v348, 0
        %v411 = vsel %vm364, %v349, 0
        %v414 = vsel %vm364, %v350, 0
        %v417 = vsel %vm364, %v351, 0
        %419 = vmatprep.subr.mxu0 0.0
        %420 = vmatpush1.xpose.msra.mxu0 %v372
        %421 = vmatprep.subr.mxu0 0.0
        %422 = vmatpush1.xpose.msra.mxu0 %v375
        %423 = vmatprep.subr.mxu0 0.0
        %424 = vmatpush1.xpose.msra.mxu0 %v378
        %425 = vmatprep.subr.mxu0 0.0
        %426 = vmatpush1.xpose.msra.mxu0 %v381
        %427 = vmatprep.subr.mxu0 0.0
        %428 = vmatpush1.xpose.msra.mxu0 %v384
        %429 = vmatprep.subr.mxu0 0.0
        %430 = vmatpush1.xpose.msra.mxu0 %v387
        %431 = vmatprep.subr.mxu0 0.0
        %432 = vmatpush1.xpose.msra.mxu0 %v390
        %433 = vmatprep.subr.mxu0 0.0
        %434 = vmatpush1.xpose.msra.mxu0 %v393
        %435 = vmatprep.subr.mxu0 0.0
        %436 = vmatpush1.xpose.msra.mxu0 %v396
        %437 = vmatprep.subr.mxu0 0.0
        %438 = vmatpush1.xpose.msra.mxu0 %v399
        %439 = vmatprep.subr.mxu0 0.0
        %440 = vmatpush1.xpose.msra.mxu0 %v402
        %441 = vmatprep.subr.mxu0 0.0
        %442 = vmatpush1.xpose.msra.mxu0 %v405
        %443 = vmatprep.subr.mxu0 0.0
        %444 = vmatpush1.xpose.msra.mxu0 %v408
        %445 = vmatprep.subr.mxu0 0.0
        %446 = vmatpush1.xpose.msra.mxu0 %v411
        %447 = vmatprep.subr.mxu0 0.0
        %448 = vmatpush1.xpose.msra.mxu0 %v414
        %449 = vmatprep.subr.mxu0 0.0
        %450 = vmatpush1.xpose.msra.mxu0 %v417
        %451 = vmatprep.subr.mxu0 0.0
        %452 = vmatpush1.xpose.msra.mxu0 0.0
        %453 = vmatprep.subr.mxu0 0.0
        %454 = vmatpush1.xpose.msra.mxu0 0.0
        %455 = vmatprep.subr.mxu0 0.0
        %456 = vmatpush1.xpose.msra.mxu0 0.0
        %457 = vmatprep.subr.mxu0 0.0
        %458 = vmatpush1.xpose.msra.mxu0 0.0
        %459 = vmatprep.subr.mxu0 0.0
        %460 = vmatpush1.xpose.msra.mxu0 0.0
        %461 = vmatprep.subr.mxu0 0.0
        %462 = vmatpush1.xpose.msra.mxu0 0.0
        %463 = vmatprep.subr.mxu0 0.0
        %464 = vmatpush1.xpose.msra.mxu0 0.0
        %465 = vmatprep.subr.mxu0 0.0
        %466 = vmatpush1.xpose.msra.mxu0 0.0
        %467 = vmatprep.subr.mxu0 0.0
        %468 = vmatpush1.xpose.msra.mxu0 0.0
        %469 = vmatprep.subr.mxu0 0.0
        %470 = vmatpush1.xpose.msra.mxu0 0.0
        %471 = vmatprep.subr.mxu0 0.0
        %472 = vmatpush1.xpose.msra.mxu0 0.0
        %473 = vmatprep.subr.mxu0 0.0
        %474 = vmatpush1.xpose.msra.mxu0 0.0
        %475 = vmatprep.subr.mxu0 0.0
        %476 = vmatpush1.xpose.msra.mxu0 0.0
        %477 = vmatprep.subr.mxu0 0.0
        %478 = vmatpush1.xpose.msra.mxu0 0.0
        %479 = vmatprep.subr.mxu0 0.0
        %480 = vmatpush1.xpose.msra.mxu0 0.0
        %481 = vmatprep.subr.mxu0 0.0
        %482 = vmatpush1.xpose.msra.mxu0 0.0
        %483 = vmatprep.mubr.f32.mxu0 0.0
        %484 = vmatmul.mubr.f32.gmra.mrb[0].mxu0 %v366
        %v485 = vpop.f32.mrb[0].mxu0
        %v486 = vadd.f32 %v357, %v485
        %v487 = vpop.f32.mrb[0].mxu0
        %488 = vmatprep.mubr.f32.mxu0 0.0
        %489 = vmatmul.mubr.f32.gmra.mrb[0].mxu0 %v369
        %v490 = vpop.f32.mrb[0].mxu0
        %v491 = vadd.f32 %v362, %v490
        %v492 = vpop.f32.mrb[0].mxu0
        %493 = vdwg.mxu0
        %v494 = vmax.f32 %v486, 0.0
        %v495 = vmax.f32 %v491, 0.0
        %v496 = vld [vmem:[%s3] sm:$0xff]
        %v497 = vld [vmem:[%s4] sm:$0xff]
        %499 = vset.pattern.permute.xlu0 0
        %500 = vperm.xlu0 %499, %v497
        %v501 = vpop.permute.xlu0 %500
        %vm503 = vcmask 130048
        %v505 = vsel %vm503, %v496, 0
        %507 = vmatprep.subr.mxu0 0.0
        %508 = vmatpush1.msra.mxu0 %v494
        %509 = vmatprep.subr.mxu0 0.0
        %510 = vmatpush1.msra.mxu0 %v495
        %511 = vmatprep.subr.mxu0 0.0
        %512 = vmatpush1.msra.mxu0 0.0
        %513 = vmatprep.subr.mxu0 0.0
        %514 = vmatpush1.msra.mxu0 0.0
        %515 = vmatprep.subr.mxu0 0.0
        %516 = vmatpush1.msra.mxu0 0.0
        %517 = vmatprep.subr.mxu0 0.0
        %518 = vmatpush1.msra.mxu0 0.0
        %519 = vmatprep.subr.mxu0 0.0
        %520 = vmatpush1.msra.mxu0 0.0
        %521 = vmatprep.subr.mxu0 0.0
        %522 = vmatpush1.msra.mxu0 0.0
        %523 = vmatprep.subr.mxu0 0.0
        %524 = vmatpush1.msra.mxu0 0.0
        %525 = vmatprep.subr.mxu0 0.0
        %526 = vmatpush1.msra.mxu0 0.0
        %527 = vmatprep.subr.mxu0 0.0
        %528 = vmatpush1.msra.mxu0 0.0
        %529 = vmatprep.subr.mxu0 0.0
        %530 = vmatpush1.msra.mxu0 0.0
        %531 = vmatprep.subr.mxu0 0.0
        %532 = vmatpush1.msra.mxu0 0.0
        %533 = vmatprep.subr.mxu0 0.0
        %534 = vmatpush1.msra.mxu0 0.0
        %535 = vmatprep.subr.mxu0 0.0
        %536 = vmatpush1.msra.mxu0 0.0
        %537 = vmatprep.subr.mxu0 0.0
        %538 = vmatpush1.msra.mxu0 0.0
        %539 = vmatprep.subr.mxu0 0.0
        %540 = vmatpush1.msra.mxu0 0.0
        %541 = vmatprep.subr.mxu0 0.0
        %542 = vmatpush1.msra.mxu0 0.0
        %543 = vmatprep.subr.mxu0 0.0
        %544 = vmatpush1.msra.mxu0 0.0
        %545 = vmatprep.subr.mxu0 0.0
        %546 = vmatpush1.msra.mxu0 0.0
        %547 = vmatprep.subr.mxu0 0.0
        %548 = vmatpush1.msra.mxu0 0.0
        %549 = vmatprep.subr.mxu0 0.0
        %550 = vmatpush1.msra.mxu0 0.0
        %551 = vmatprep.subr.mxu0 0.0
        %552 = vmatpush1.msra.mxu0 0.0
        %553 = vmatprep.subr.mxu0 0.0
        %554 = vmatpush1.msra.mxu0 0.0
        %555 = vmatprep.subr.mxu0 0.0
        %556 = vmatpush1.msra.mxu0 0.0
        %557 = vmatprep.subr.mxu0 0.0
        %558 = vmatpush1.msra.mxu0 0.0
        %559 = vmatprep.subr.mxu0 0.0
        %560 = vmatpush1.msra.mxu0 0.0
        %561 = vmatprep.subr.mxu0 0.0
        %562 = vmatpush1.msra.mxu0 0.0
        %563 = vmatprep.subr.mxu0 0.0
        %564 = vmatpush1.msra.mxu0 0.0
        %565 = vmatprep.subr.mxu0 0.0
        %566 = vmatpush1.msra.mxu0 0.0
        %567 = vmatprep.subr.mxu0 0.0
        %568 = vmatpush1.msra.mxu0 0.0
        %569 = vmatprep.subr.mxu0 0.0
        %570 = vmatpush1.msra.mxu0 0.0
        %571 = vmatprep.mubr.f32.mxu0 0.0
        %572 = vmatmul.mubr.f32.gmra.mrb[0].mxu0 %v505
        %v573 = vpop.f32.mrb[0].mxu0
        %v574 = vadd.f32 %v501, %v573
        %v575 = vpop.f32.mrb[0].mxu0
        %576 = vdwg.mxu0
        %v577 = vmax.f32 %v574, 0.0
        %v578 = vld [vmem:[%s5] sm:$0xf]
        %v579 = vld [vmem:[%s6] sm:$0xf]
        %581 = vset.pattern.permute.xlu0 0
        %582 = vperm.xlu0 %581, %v579
        %v583 = vpop.permute.xlu0 %582
        %vm585 = vcmask 64512
        %v587 = vsel %vm585, %v578, 0
        %589 = vmatprep.subr.mxu0 0.0
        %590 = vmatpush1.msra.mxu0 %v577
        %591 = vmatprep.subr.mxu0 0.0
        %592 = vmatpush1.msra.mxu0 0.0
        %593 = vmatprep.subr.mxu0 0.0
        %594 = vmatpush1.msra.mxu0 0.0
        %595 = vmatprep.subr.mxu0 0.0
        %596 = vmatpush1.msra.mxu0 0.0
        %597 = vmatprep.subr.mxu0 0.0
        %598 = vmatpush1.msra.mxu0 0.0
        %599 = vmatprep.subr.mxu0 0.0
        %600 = vmatpush1.msra.mxu0 0.0
        %601 = vmatprep.subr.mxu0 0.0
        %602 = vmatpush1.msra.mxu0 0.0
        %603 = vmatprep.subr.mxu0 0.0
        %604 = vmatpush1.msra.mxu0 0.0
        %605 = vmatprep.subr.mxu0 0.0
        %606 = vmatpush1.msra.mxu0 0.0
        %607 = vmatprep.subr.mxu0 0.0
        %608 = vmatpush1.msra.mxu0 0.0
        %609 = vmatprep.subr.mxu0 0.0
        %610 = vmatpush1.msra.mxu0 0.0
        %611 = vmatprep.subr.mxu0 0.0
        %612 = vmatpush1.msra.mxu0 0.0
        %613 = vmatprep.subr.mxu0 0.0
        %614 = vmatpush1.msra.mxu0 0.0
        %615 = vmatprep.subr.mxu0 0.0
        %616 = vmatpush1.msra.mxu0 0.0
        %617 = vmatprep.subr.mxu0 0.0
        %618 = vmatpush1.msra.mxu0 0.0
        %619 = vmatprep.subr.mxu0 0.0
        %620 = vmatpush1.msra.mxu0 0.0
        %621 = vmatprep.subr.mxu0 0.0
        %622 = vmatpush1.msra.mxu0 0.0
        %623 = vmatprep.subr.mxu0 0.0
        %624 = vmatpush1.msra.mxu0 0.0
        %625 = vmatprep.subr.mxu0 0.0
        %626 = vmatpush1.msra.mxu0 0.0
        %627 = vmatprep.subr.mxu0 0.0
        %628 = vmatpush1.msra.mxu0 0.0
        %629 = vmatprep.subr.mxu0 0.0
        %630 = vmatpush1.msra.mxu0 0.0
        %631 = vmatprep.subr.mxu0 0.0
        %632 = vmatpush1.msra.mxu0 0.0
        %633 = vmatprep.subr.mxu0 0.0
        %634 = vmatpush1.msra.mxu0 0.0
        %635 = vmatprep.subr.mxu0 0.0
        %636 = vmatpush1.msra.mxu0 0.0
        %637 = vmatprep.subr.mxu0 0.0
        %638 = vmatpush1.msra.mxu0 0.0
        %639 = vmatprep.subr.mxu0 0.0
        %640 = vmatpush1.msra.mxu0 0.0
        %641 = vmatprep.subr.mxu0 0.0
        %642 = vmatpush1.msra.mxu0 0.0
        %643 = vmatprep.subr.mxu0 0.0
        %644 = vmatpush1.msra.mxu0 0.0
        %645 = vmatprep.subr.mxu0 0.0
        %646 = vmatpush1.msra.mxu0 0.0
        %647 = vmatprep.subr.mxu0 0.0
        %648 = vmatpush1.msra.mxu0 0.0
        %649 = vmatprep.subr.mxu0 0.0
        %650 = vmatpush1.msra.mxu0 0.0
        %651 = vmatprep.subr.mxu0 0.0
        %652 = vmatpush1.msra.mxu0 0.0
        %653 = vmatprep.mubr.f32.mxu0 0.0
        %654 = vmatmul.mubr.f32.gmra.mrb[0].mxu0 %v587
        %v655 = vpop.f32.mrb[0].mxu0
        %v656 = vadd.f32 %v583, %v655
        %v657 = vpop.f32.mrb[0].mxu0
        %658 = vdwg.mxu0
        %v659 = vmax.f32 %v656, 0.0
        %v660 = vld [vmem:[%s7] sm:$0x1]
        %v661 = vld [vmem:[#allocation2] sm:$0x1]
        %663 = vset.pattern.permute.xlu0 0
        %664 = vperm.xlu0 %663, %v661
        %v665 = vpop.permute.xlu0 %664
        %v667 = vlaneseq
        %v668 = vshrl.u32 %v667, 7
        %v669 = vsub.s32 0, %v668
        %v670 = vrot.slane %v665, %v669
        %vm671 = vcmask 31744
        %v673 = vsel %vm671, %v660, 0
        %vm675 = vcmask 1043456
        %v677 = vsel %vm675, %v659, 0
        %679 = vmatprep.subr.mxu0 0.0
        %680 = vmatpush1.msra.mxu0 %v677
        %681 = vmatprep.subr.mxu0 0.0
        %682 = vmatpush1.msra.mxu0 0.0
        %683 = vmatprep.subr.mxu0 0.0
        %684 = vmatpush1.msra.mxu0 0.0
        %685 = vmatprep.subr.mxu0 0.0
        %686 = vmatpush1.msra.mxu0 0.0
        %687 = vmatprep.subr.mxu0 0.0
        %688 = vmatpush1.msra.mxu0 0.0
        %689 = vmatprep.subr.mxu0 0.0
        %690 = vmatpush1.msra.mxu0 0.0
        %691 = vmatprep.subr.mxu0 0.0
        %692 = vmatpush1.msra.mxu0 0.0
        %693 = vmatprep.subr.mxu0 0.0
        %694 = vmatpush1.msra.mxu0 0.0
        %695 = vmatprep.subr.mxu0 0.0
        %696 = vmatpush1.msra.mxu0 0.0
        %697 = vmatprep.subr.mxu0 0.0
        %698 = vmatpush1.msra.mxu0 0.0
        %699 = vmatprep.subr.mxu0 0.0
        %700 = vmatpush1.msra.mxu0 0.0
        %701 = vmatprep.subr.mxu0 0.0
        %702 = vmatpush1.msra.mxu0 0.0
        %703 = vmatprep.subr.mxu0 0.0
        %704 = vmatpush1.msra.mxu0 0.0
        %705 = vmatprep.subr.mxu0 0.0
        %706 = vmatpush1.msra.mxu0 0.0
        %707 = vmatprep.subr.mxu0 0.0
        %708 = vmatpush1.msra.mxu0 0.0
        %709 = vmatprep.subr.mxu0 0.0
        %710 = vmatpush1.msra.mxu0 0.0
        %711 = vmatprep.subr.mxu0 0.0
        %712 = vmatpush1.msra.mxu0 0.0
        %713 = vmatprep.subr.mxu0 0.0
        %714 = vmatpush1.msra.mxu0 0.0
        %715 = vmatprep.subr.mxu0 0.0
        %716 = vmatpush1.msra.mxu0 0.0
        %717 = vmatprep.subr.mxu0 0.0
        %718 = vmatpush1.msra.mxu0 0.0
        %719 = vmatprep.subr.mxu0 0.0
        %720 = vmatpush1.msra.mxu0 0.0
        %721 = vmatprep.subr.mxu0 0.0
        %722 = vmatpush1.msra.mxu0 0.0
        %723 = vmatprep.subr.mxu0 0.0
        %724 = vmatpush1.msra.mxu0 0.0
        %725 = vmatprep.subr.mxu0 0.0
        %726 = vmatpush1.msra.mxu0 0.0
        %727 = vmatprep.subr.mxu0 0.0
        %728 = vmatpush1.msra.mxu0 0.0
        %729 = vmatprep.subr.mxu0 0.0
        %730 = vmatpush1.msra.mxu0 0.0
        %731 = vmatprep.subr.mxu0 0.0
        %732 = vmatpush1.msra.mxu0 0.0
        %733 = vmatprep.subr.mxu0 0.0
        %734 = vmatpush1.msra.mxu0 0.0
        %735 = vmatprep.subr.mxu0 0.0
        %736 = vmatpush1.msra.mxu0 0.0
        %737 = vmatprep.subr.mxu0 0.0
        %738 = vmatpush1.msra.mxu0 0.0
        %739 = vmatprep.subr.mxu0 0.0
        %740 = vmatpush1.msra.mxu0 0.0
        %741 = vmatprep.subr.mxu0 0.0
        %742 = vmatpush1.msra.mxu0 0.0
        %743 = vmatprep.mubr.f32.mxu0 0.0
        %744 = vmatmul.mubr.f32.gmra.mrb[0].mxu0 %v673
        %v745 = vpop.f32.mrb[0].mxu0
        %v746 = vadd.f32 %v670, %v745
        %v747 = vpop.f32.mrb[0].mxu0
        %748 = vdwg.mxu0
        %v749 = vxor.u32 %v746, 2147483648
        %v750 = vmul.f32 %v749, 1.442695
        %v751 = vpow.pop %v750
        %v752 = vadd.f32 %v751, 1.0
        %v753 = vrcp.pop %v752
        %v754 = vmul.f32 1.0, %v753
        %755 = vst [vmem:[%s327] sm:$0x1] %v754
        %s756 = sand.u32 %s227, 1
        %s757 = scalar_lea.sflag [#allocation4], %s756
        %s758 = sand.u32 %s227, 1
        %s759 = scalar_lea.vmem [#allocation3], %s758
        // Predicated region
        $region57: #{tpu_custom_call.1} parent=55 // pred_check
          %p760 = pneg %p237
        $region58: #{tpu_custom_call.1} parent=55 // pred_check_branch
          %762 = sbr.rel (%p760) target = $region60
        $region59: #{tpu_custom_call.1} parent=55 // pred_region
          %s764 = ssub.s32 16, 16
          %765 = vsyncadd %s757, %s764
          %s766 = smul.addr %s25, 16
          %s767 = scalar_lea.hbm %s9, %s766
          %s769 = sshll.u32 %s759, 4
          %s770 = int_to_ptr.vmem [resolvable:$true] %s769
          %772 = dma.vmem_to_hbm [thread:$0]  %s770, 16, %s767, %s757
        $region60: #{tpu_custom_call.1} parent=55 // pred_fallthru
          _
      $region56: #{tpu_custom_call.1} parent=5 // pred_fallthru
        _
      %p773 = scmp.le.s32.totalorder 2, %s20
      // Predicated region
      $region61: #{tpu_custom_call.1} parent=5 // pred_check
        %p774 = pneg %p773
      $region62: #{tpu_custom_call.1} parent=5 // pred_check_branch
        %776 = sbr.rel (%p774) target = $region64
      $region63: #{tpu_custom_call.1} parent=5 // pred_region
        %s777 = ssub.s32 %s20, 2
        // Predicated region
        $region65: #{tpu_custom_call.1} parent=63 // pred_check
          %p778 = pneg %p243
        $region66: #{tpu_custom_call.1} parent=63 // pred_check_branch
          %780 = sbr.rel (%p778) target = $region68
        $region67: #{tpu_custom_call.1} parent=63 // pred_region
          %s781 = sand.u32 %s228, 1
          %s782 = scalar_lea.sflag [#allocation4], %s781
          %s783 = sand.u32 %s228, 1
          %s784 = scalar_lea.vmem [#allocation3], %s783
          %785 = dma.done %s782, 16
        $region68: #{tpu_custom_call.1} parent=63 // pred_fallthru
          _
      $region64: #{tpu_custom_call.1} parent=5 // pred_fallthru
        _
    $region6: #{tpu_custom_call.1} parent=1 // loop_footer
      %s24 = sadd.s32 1, %s20
    $region7: #{tpu_custom_call.1} parent=1 // loop_footer_branch
      %19 = sbr.rel target = $region3
    $region8: #{tpu_custom_call.1} parent=1 // loop_exit
      _
    %786 = vsyncpa [#allocation4], 1
    %s787 = scalar_lea.sflag [#allocation4], 1
    %788 = vsyncpa %s787, 1

</llo_original>
